<compile_context>
chip_gen: v5e
topology: v5e:2x2
jax: 0.10.0
libtpu: 0.0.40
codegen_flags: <defaults>
</compile_context>

<pallas_src>
import functools

import jax
import jax.numpy as jnp
from jax.experimental import pallas as pl
from jax.experimental.pallas import tpu as pltpu


def _round_up(v: int, m: int) -> int:
    return ((v + m - 1) // m) * m


def matmul_kernel_single_k(x_ref, y_ref, o_ref):
    # Whole K reduction fits in one tile: no scratch accumulator needed.
    o_ref[...] = jnp.dot(
        x_ref[...], y_ref[...], preferred_element_type=jnp.float32
    ).astype(o_ref.dtype)


def matmul_kernel(x_ref, y_ref, o_ref, acc_ref):
    # Zero the f32 accumulator at the start of the K reduction.
    @pl.when(pl.program_id(2) == 0)
    def _():
        acc_ref[...] = jnp.zeros_like(acc_ref)

    acc_ref[...] += jnp.dot(
        x_ref[...], y_ref[...], preferred_element_type=jnp.float32
    )

    # Write back (and cast) only once, on the last K step.
    @pl.when(pl.program_id(2) == pl.num_programs(2) - 1)
    def _():
        o_ref[...] = acc_ref[...].astype(o_ref.dtype)


@functools.partial(jax.jit, static_argnames=("tm", "tn", "tk"))
def matmul(x, y, *, tm: int = 256, tn: int = 256, tk: int = 512):
    """General tiled matmul: x (M, K) @ y (K, N) -> (M, N)."""
    M, K = x.shape
    K2, N = y.shape
    assert K == K2, "inner dimensions must match"
    out_dtype = jnp.promote_types(x.dtype, y.dtype)

    # --- Pad to lane-dense, tile-aligned shapes (zeros are matmul-neutral). ---
    m_pad = _round_up(M, 8)
    k_pad = _round_up(K, 128)
    n_pad = _round_up(N, 128)
    # Shrink tiles for small problems (tile == full padded dim is always legal).
    tm = min(tm, m_pad)
    tk = min(tk, k_pad)
    tn = min(tn, n_pad)
    # Make padded extents multiples of the chosen tiles.
    m_pad = _round_up(m_pad, tm)
    k_pad = _round_up(k_pad, tk)
    n_pad = _round_up(n_pad, tn)

    xp = x if (m_pad, k_pad) == (M, K) else jnp.pad(
        x, ((0, m_pad - M), (0, k_pad - K)))
    yp = y if (k_pad, n_pad) == (K, N) else jnp.pad(
        y, ((0, k_pad - K), (0, n_pad - N)))

    grid = (m_pad // tm, n_pad // tn, k_pad // tk)
    single_k = grid[2] == 1

    itemsize = jnp.dtype(out_dtype).itemsize
    # Double-buffered inputs + double-buffered output tile (+ f32 accumulator
    # only on the multi-K path).
    vmem_needed = (2 * (tm * tk + tk * tn) * itemsize
                   + 2 * tm * tn * itemsize
                   + (0 if single_k else tm * tn * 4))
    vmem_limit = min(max(2 * vmem_needed, 16 * 1024 * 1024), 48 * 1024 * 1024)

    cost = pl.CostEstimate(
        flops=2 * M * N * K,
        transcendentals=0,
        bytes_accessed=(M * K + K * N + M * N) * itemsize,
    )

    kernel = matmul_kernel_single_k if single_k else matmul_kernel
    scratch = [] if single_k else [pltpu.VMEM((tm, tn), jnp.float32)]

    out_padded = pl.pallas_call(
        kernel,
        out_shape=jax.ShapeDtypeStruct((m_pad, n_pad), out_dtype),
        grid_spec=pltpu.PrefetchScalarGridSpec(
            num_scalar_prefetch=0,
            grid=grid,
            in_specs=[
                pl.BlockSpec((tm, tk), lambda i, j, k: (i, k)),
                pl.BlockSpec((tk, tn), lambda i, j, k: (k, j)),
            ],
            out_specs=pl.BlockSpec((tm, tn), lambda i, j, k: (i, j)),
            scratch_shapes=scratch,
        ),
        compiler_params=pltpu.CompilerParams(
            dimension_semantics=("parallel", "parallel", "arbitrary"),
            vmem_limit_bytes=vmem_limit,
        ),
        cost_estimate=cost,
    )(xp, yp)

    # Slice away the padding.
    return out_padded[:M, :N]


if __name__ == "__main__":
    key = jax.random.PRNGKey(0)
    kx, ky = jax.random.split(key)
    # Matches torch.rand(shape0) / torch.rand(shape1): uniform [0, 1), float32.
    x = jax.random.uniform(kx, (2, 3), dtype=jnp.float32)
    y = jax.random.uniform(ky, (3, 3), dtype=jnp.float32)

    z = matmul(x, y)
    jax.block_until_ready(z)

    # Sanity check against plain JAX reference.
    z_ref = jnp.matmul(x, y)
    assert z.shape == (2, 3) and z.dtype == jnp.float32
    assert jnp.allclose(z, z_ref, atol=1e-5, rtol=1e-5)

    # Also exercise a non-toy, non-aligned shape to validate the tiled
    # multi-K-step path (grid_k > 1).
    ka, kb = jax.random.split(ky)
    a = jax.random.uniform(ka, (300, 700), dtype=jnp.float32)
    b = jax.random.uniform(kb, (700, 513), dtype=jnp.float32)
    c = matmul(a, b)
    jax.block_until_ready(c)
    assert jnp.allclose(c, jnp.matmul(a, b), atol=1e-3, rtol=1e-3)

    print("KERNEL_OK")
</pallas_src>

<mosaic_0001>
module attributes {stable_mosaic.version = 11 : i64} {
  func.func @matmul_kernel_single_k(%arg0: i32, %arg1: i32, %arg2: i32, %arg3: memref<8x128xf32, #tpu.memory_space<vmem>>, %arg4: memref<128x128xf32, #tpu.memory_space<vmem>>, %arg5: memref<8x128xf32, #tpu.memory_space<vmem>>) attributes {dimension_semantics = [#tpu.dimension_semantics<parallel>, #tpu.dimension_semantics<parallel>, #tpu.dimension_semantics<arbitrary>], iteration_bounds = array<i64: 1, 1, 1>, scalar_prefetch = 0 : i64, scratch_operands = 0 : i64, tpu.core_type = #tpu.core_type<tc>, window_params = [{transform_indices = @transform_0, window_bounds = array<i64: 8, 128>}, {transform_indices = @transform_1, window_bounds = array<i64: 128, 128>}, {transform_indices = @transform_2, window_bounds = array<i64: 8, 128>}]} {
    %c0 = arith.constant 0 : index
    %c0_0 = arith.constant 0 : index
    %0 = vector.load %arg3[%c0, %c0_0] : memref<8x128xf32, #tpu.memory_space<vmem>>, vector<8x128xf32>
    %c0_1 = arith.constant 0 : index
    %c0_2 = arith.constant 0 : index
    %1 = vector.load %arg4[%c0_1, %c0_2] : memref<128x128xf32, #tpu.memory_space<vmem>>, vector<128x128xf32>
    %cst = arith.constant dense<0.000000e+00> : vector<8x128xf32>
    %2 = tpu.matmul %0, %1, %cst {dimension_numbers = #tpu.dot_dimension_numbers<[1], [0], [0], [1], [0, 0, 1, 1], [], []>} : vector<8x128xf32>, vector<128x128xf32>, vector<8x128xf32> -> vector<8x128xf32>
    %c0_3 = arith.constant 0 : index
    %c0_4 = arith.constant 0 : index
    %3 = vector.load %arg5[%c0_3, %c0_4] : memref<8x128xf32, #tpu.memory_space<vmem>>, vector<8x128xf32>
    tpu.vector_store %arg5[%c0_3, %c0_4], %2 {strides = array<i32>} : memref<8x128xf32, #tpu.memory_space<vmem>>, vector<8x128xf32>,
    return
  }
  func.func @transform_0(%arg0: i32, %arg1: i32, %arg2: i32) -> (i32, i32) {
    %c0_i32 = arith.constant 0 : i32
    return %arg0, %arg2 : i32, i32
  }
  func.func @transform_1(%arg0: i32, %arg1: i32, %arg2: i32) -> (i32, i32) {
    %c0_i32 = arith.constant 0 : i32
    return %arg2, %arg1 : i32, i32
  }
  func.func @transform_2(%arg0: i32, %arg1: i32, %arg2: i32) -> (i32, i32) {
    %c0_i32 = arith.constant 0 : i32
    return %arg0, %arg1 : i32, i32
  }
}

</mosaic_0001>

<llo_original>
// kernel: matmul.1
$region0: #{matmul.1}
  #allocation0 [shape = 'u32[]', space=smem, size = 0x4, offset = 0x4, fixed_abs, tag = 'smem constant byte address 0x4 - core index']
  #allocation1 [shape = 'u32[72,128]{1,0:T(1,128)}', space=vmem, size = 0x9000, scoped, tag = 'internal scratch']
  %s0 = inlined_call_operand.vmem [shape: f32[8,128], index: 0, kind: input, shape index: {}]
  %s1 = inlined_call_operand.vmem [shape: f32[128,128], index: 1, kind: input, shape index: {}]
  %s2 = inlined_call_operand.vmem [shape: f32[8,128], index: 2, kind: output, shape index: {}]
  %s3 = sld [smem:[#allocation0]]
  $region18: #{matmul.1} parent=0
    _
  %s5 = ssub.s32 1, %s3
  %s6 = scalar_select 0, %s5, %s3
  // Predicated region
  $region2: #{matmul.1} parent=0 // pred_check
    _
  $region3: #{matmul.1} parent=0 // pred_check_branch
    %8 = sbr.rel (0) target = $region5
  $region4: #{matmul.1} parent=0 // pred_region
    _
  $region5: #{matmul.1} parent=0 // pred_fallthru
    _
  // Predicated region
  $region6: #{matmul.1} parent=0 // pred_check
    _
  $region7: #{matmul.1} parent=0 // pred_check_branch
    %10 = sbr.rel (0) target = $region9
  $region8: #{matmul.1} parent=0 // pred_region
    _
  $region9: #{matmul.1} parent=0 // pred_fallthru
    _
  %v11 = vld [vmem:[%s0] sm:$0xff]
  %v12 = vld [vmem:[%s1] sm:$0xff]
  %v13 = vld [vmem:[%s1 + $0x8] sm:$0xff]
  %v14 = vld [vmem:[%s1 + $0x10] sm:$0xff]
  %v15 = vld [vmem:[%s1 + $0x18] sm:$0xff]
  %v16 = vld [vmem:[%s1 + $0x20] sm:$0xff]
  %v17 = vld [vmem:[%s1 + $0x28] sm:$0xff]
  %v18 = vld [vmem:[%s1 + $0x30] sm:$0xff]
  %v19 = vld [vmem:[%s1 + $0x38] sm:$0xff]
  %v20 = vld [vmem:[%s1 + $0x40] sm:$0xff]
  %v21 = vld [vmem:[%s1 + $0x48] sm:$0xff]
  %v22 = vld [vmem:[%s1 + $0x50] sm:$0xff]
  %v23 = vld [vmem:[%s1 + $0x58] sm:$0xff]
  %v24 = vld [vmem:[%s1 + $0x60] sm:$0xff]
  %v25 = vld [vmem:[%s1 + $0x68] sm:$0xff]
  %v26 = vld [vmem:[%s1 + $0x70] sm:$0xff]
  %v27 = vld [vmem:[%s1 + $0x78] sm:$0xff]
  %28 = vmatpush.msra.mxu0 %v27
  %29 = vmatpush.msra.mxu0 %v26
  %30 = vmatpush.msra.mxu0 %v25
  %31 = vmatpush.msra.mxu0 %v24
  %32 = vmatpush.msra.mxu0 %v23
  %33 = vmatpush.msra.mxu0 %v22
  %34 = vmatpush.msra.mxu0 %v21
  %35 = vmatpush.msra.mxu0 %v20
  %36 = vmatpush.msra.mxu0 %v19
  %37 = vmatpush.msra.mxu0 %v18
  %38 = vmatpush.msra.mxu0 %v17
  %39 = vmatpush.msra.mxu0 %v16
  %40 = vmatpush.msra.mxu0 %v15
  %41 = vmatpush.msra.mxu0 %v14
  %42 = vmatpush.msra.mxu0 %v13
  %43 = vmatpush.msra.mxu0 %v12
  %44 = vmatmul.f32.gmra.mxu0 %v11
  %v45 = vpop.f32.mrf.mxu0
  %v46 = vadd.f32 0.0, %v45
  %47 = vdwg.mxu0
  %48 = vst [vmem:[%s2] sm:$0xff] %v46
  // Predicated region
  $region10: #{matmul.1} parent=0 // pred_check
    _
  $region11: #{matmul.1} parent=0 // pred_check_branch
    %50 = sbr.rel (0) target = $region13
  $region12: #{matmul.1} parent=0 // pred_region
    _
  $region13: #{matmul.1} parent=0 // pred_fallthru
    _
  // Predicated region
  $region14: #{matmul.1} parent=0 // pred_check
    _
  $region15: #{matmul.1} parent=0 // pred_check_branch
    %52 = sbr.rel (0) target = $region17
  $region16: #{matmul.1} parent=0 // pred_region
    _
  $region17: #{matmul.1} parent=0 // pred_fallthru
    _

</llo_original>
